<compile_context>
chip_gen: v7x
topology: tpu7x:2x2x1
jax: 0.10.0
libtpu: 0.0.40
codegen_flags: <defaults>
</compile_context>

<pallas_src>
import jax
import jax.numpy as jnp
from jax.experimental import pallas as pl
from jax.experimental.pallas import tpu as pltpu


def _round_up(x, m):
    return ((x + m - 1) // m) * m


def _vmem_capacity_bytes():
    try:
        return int(pltpu.get_tpu_info().vmem_capacity_bytes)
    except Exception:
        return 64 * 1024 * 1024  # conservative (v7x per-TC physical VMEM)


# ----------------------------------------------------------------------------
# Fused path: index computation + gather in one kernel, table resident in VMEM.
# ----------------------------------------------------------------------------
def _fused_lookup_kernel(ptids_ref, ids_ref, w_ref, out_ref):
    # ptids_ref: (tn, 1)        int32  query prompt token ids (sublane column)
    # ids_ref:   (1, L_pad)     int32  registered prompt ids  (lane row, pad = -1)
    # w_ref:     (L_pad, D_pad)        embedding table (padded rows are zeros)
    # out_ref:   (tn, D_pad)           gathered embeddings
    pt = ptids_ref[...]                                    # (tn, 1)
    ids = ids_ref[...]                                     # (1, L_pad)
    tn = pt.shape[0]
    l_pad = ids.shape[1]

    eq = pt == ids                                         # (tn, L_pad)
    col = jax.lax.broadcasted_iota(jnp.int32, (tn, l_pad), 1)
    sentinel = jnp.int32(l_pad)
    first = jnp.min(jnp.where(eq, col, sentinel), axis=1, keepdims=True)   # (tn, 1)
    idx = jnp.where(first == sentinel, jnp.int32(0), first)                # no match -> row 0

    # Exactly one 1.0 per row -> MXU matmul is an exact row gather.
    onehot = (col == idx).astype(w_ref.dtype)              # (tn, L_pad)
    out_ref[...] = jnp.dot(
        onehot, w_ref[...],
        preferred_element_type=jnp.float32,
        precision=jax.lax.Precision.HIGHEST,
    ).astype(out_ref.dtype)


# ----------------------------------------------------------------------------
# Fallback path (table too big for VMEM): declarative scalar-prefetch row gather.
# The prefetched index array drives the weight BlockSpec; the pipeline
# double-buffers the per-row HBM->VMEM copies automatically.
# ----------------------------------------------------------------------------
def _row_gather_kernel(idx_ref, w_row_ref, out_ref):
    del idx_ref  # consumed by the index_map only
    out_ref[...] = w_row_ref[...]


def prompt_encoder_forward(prompt_token_ids, input_ids, embedding_weight, *, row_block=256):
    """PromptEncoder.forward(prompt_token_ids) with non-empty self.input_ids."""
    N = int(prompt_token_ids.shape[0])
    L, D = embedding_weight.shape
    itemsize = embedding_weight.dtype.itemsize

    ptids = prompt_token_ids.astype(jnp.int32)
    ids = input_ids.astype(jnp.int32)

    # ---- tiling over query tokens -------------------------------------------
    n_pad = _round_up(max(N, 1), 8)
    tn = min(row_block, n_pad)
    if n_pad >= 16:                       # >= 2 tiles so both v7x TCs get work
        tn = min(tn, _round_up((n_pad + 1) // 2, 8))
    n_pad = _round_up(n_pad, tn)
    num_tiles = n_pad // tn

    d_pad = _round_up(D, 128)             # lane-dense output blocks
    l_pad = _round_up(L, 128)

    table_bytes = l_pad * d_pad * itemsize
    out_tile_bytes = tn * d_pad * 4
    vmem_cap = _vmem_capacity_bytes()
    fits_vmem = (2 * table_bytes + 4 * out_tile_bytes + (2 << 20)) <= vmem_cap // 2

    # Query ids as a sublane column; padding value -2 never matches a token id
    # (padded rows are sliced off at the end anyway).
    ptids_col = jnp.pad(ptids, (0, n_pad - N), constant_values=-2).reshape(n_pad, 1)

    if fits_vmem:
        # Registered ids padded with -1 (token ids are >= 0, so padding never matches).
        ids_row = jnp.pad(ids, (0, l_pad - L), constant_values=-1).reshape(1, l_pad)
        w_pad = jnp.pad(embedding_weight, ((0, l_pad - L), (0, d_pad - D)))

        vmem_limit = int(min(
            vmem_cap,
            max(4 << 20, 2 * table_bytes + 4 * out_tile_bytes + (2 << 20)),
        ))

        out = pl.pallas_call(
            _fused_lookup_kernel,
            out_shape=jax.ShapeDtypeStruct((n_pad, d_pad), embedding_weight.dtype),
            grid_spec=pltpu.PrefetchScalarGridSpec(
                num_scalar_prefetch=0,
                grid=(num_tiles,),
                in_specs=[
                    pl.BlockSpec((tn, 1), lambda i: (i, 0)),          # query ids tile
                    pl.BlockSpec((1, l_pad), lambda i: (0, 0)),       # ids: resident
                    pl.BlockSpec((l_pad, d_pad), lambda i: (0, 0)),   # table: resident
                ],
                out_specs=pl.BlockSpec((tn, d_pad), lambda i: (i, 0)),
            ),
            compiler_params=pltpu.CompilerParams(
                dimension_semantics=("parallel",),
                vmem_limit_bytes=vmem_limit,
            ),
        )(ptids_col, ids_row, w_pad)
        return out[:N, :D]

    # ---- fallback: table stays in HBM ---------------------------------------
    # index_list is an L x N int compare -> plain XLA, no kernel launch needed.
    idx = jnp.argmax((ptids[:, None] == ids[None, :]).astype(jnp.int32), axis=1)
    idx = jnp.pad(idx.astype(jnp.int32), (0, n_pad - N))

    out = pl.pallas_call(
        _row_gather_kernel,
        out_shape=jax.ShapeDtypeStruct((n_pad, D), embedding_weight.dtype),
        grid_spec=pltpu.PrefetchScalarGridSpec(
            num_scalar_prefetch=1,
            grid=(n_pad,),
            in_specs=[pl.BlockSpec((1, D), lambda i, idx_ref: (idx_ref[i], 0))],
            out_specs=pl.BlockSpec((1, D), lambda i, idx_ref: (i, 0)),
        ),
        compiler_params=pltpu.CompilerParams(
            dimension_semantics=("arbitrary",),
        ),
    )(idx, embedding_weight)
    return out[:N]


if __name__ == "__main__":
    key = jax.random.PRNGKey(0)
    k_emb, k_perm = jax.random.split(key)

    # Synthetic PromptEncoder config: L prompt tokens, hidden size D.
    L = 8          # self.length
    D = 128        # model.config.hidden_size
    N = 8          # number of query prompt_token_ids passed to forward()
    id_offset = 1000

    # self.prompt_ids / self.input_ids : vocab ids of the registered prompt tokens.
    input_ids = jnp.arange(id_offset, id_offset + L, dtype=jnp.int32)

    # nn.Embedding(L, D) weight, init_embedding() with no init_embs: uniform(-0.5, 0.5).
    embedding_weight = jax.random.uniform(
        k_emb, (L, D), dtype=jnp.float32, minval=-0.5, maxval=0.5
    )

    # Query token ids: shuffled registered ids, plus one unknown id to exercise
    # the torch ".int().argmax() == 0 when no match" path.
    perm = jax.random.permutation(k_perm, L)
    prompt_token_ids = input_ids[perm][:N]
    prompt_token_ids = prompt_token_ids.at[-1].set(jnp.int32(999_999))

    out = prompt_encoder_forward(prompt_token_ids, input_ids, embedding_weight)
    out = jax.block_until_ready(out)

    # Pure-JAX reference of the PyTorch semantics.
    eq = (prompt_token_ids[:, None] == input_ids[None, :]).astype(jnp.int32)
    ref_idx = jnp.argmax(eq, axis=1)
    ref = embedding_weight[ref_idx]
    assert out.shape == (N, D)
    assert jnp.allclose(out, ref, atol=1e-5, rtol=1e-5), "mismatch vs reference"

    print("KERNEL_OK")
</pallas_src>

<mosaic_0001>
module attributes {stable_mosaic.version = 11 : i64} {
  func.func @_fused_lookup_kernel(%arg0: i32, %arg1: memref<8x1xi32, #tpu.memory_space<vmem>>, %arg2: memref<1x128xi32, #tpu.memory_space<vmem>>, %arg3: memref<128x128xf32, #tpu.memory_space<vmem>>, %arg4: memref<8x128xf32, #tpu.memory_space<vmem>>) attributes {dimension_semantics = [#tpu.dimension_semantics<parallel>], iteration_bounds = array<i64: 1>, scalar_prefetch = 0 : i64, scratch_operands = 0 : i64, tpu.core_type = #tpu.core_type<tc>, window_params = [{transform_indices = @transform_0, window_bounds = array<i64: 8, 1>}, {pipeline_mode = #tpu.pipeline_mode<synchronous>, transform_indices = @transform_1, window_bounds = array<i64: 1, 128>}, {pipeline_mode = #tpu.pipeline_mode<synchronous>, transform_indices = @transform_2, window_bounds = array<i64: 128, 128>}, {transform_indices = @transform_3, window_bounds = array<i64: 8, 128>}]} {
    %c0 = arith.constant 0 : index
    %c0_0 = arith.constant 0 : index
    %0 = vector.load %arg1[%c0, %c0_0] : memref<8x1xi32, #tpu.memory_space<vmem>>, vector<8x1xi32>
    %c0_1 = arith.constant 0 : index
    %c0_2 = arith.constant 0 : index
    %1 = vector.load %arg2[%c0_1, %c0_2] : memref<1x128xi32, #tpu.memory_space<vmem>>, vector<1x128xi32>
    %2 = vector.broadcast %0 : vector<8x1xi32> to vector<8x128xi32>
    %3 = vector.broadcast %1 : vector<1x128xi32> to vector<8x128xi32>
    %4 = arith.cmpi eq, %2, %3 : vector<8x128xi32>
    %5 = tpu.iota {dimensions = array<i32: 1>} : vector<8x128xi32>
    %c128_i32 = arith.constant 128 : i32
    %6 = vector.broadcast %c128_i32 : i32 to vector<8x128xi32>
    %7 = arith.select %4, %5, %6 : vector<8x128xi1>, vector<8x128xi32>
    %cst = arith.constant dense<2147483647> : vector<8xi32>
    %8 = vector.multi_reduction <minsi>, %7, %cst [1] : vector<8x128xi32> to vector<8xi32>
    %9 = vector.shape_cast %8 : vector<8xi32> to vector<8x1xi32>
    %c128_i32_3 = arith.constant 128 : i32
    %10 = vector.broadcast %c128_i32_3 : i32 to vector<8x1xi32>
    %11 = arith.cmpi eq, %9, %10 : vector<8x1xi32>
    %c0_i32 = arith.constant 0 : i32
    %12 = vector.broadcast %c0_i32 : i32 to vector<8x1xi32>
    %13 = arith.select %11, %12, %9 : vector<8x1xi1>, vector<8x1xi32>
    %14 = vector.broadcast %13 : vector<8x1xi32> to vector<8x128xi32>
    %15 = arith.cmpi eq, %5, %14 : vector<8x128xi32>
    %16 = arith.extui %15 : vector<8x128xi1> to vector<8x128xi32>
    %17 = arith.sitofp %16 : vector<8x128xi32> to vector<8x128xf32>
    %c0_4 = arith.constant 0 : index
    %c0_5 = arith.constant 0 : index
    %18 = vector.load %arg3[%c0_4, %c0_5] : memref<128x128xf32, #tpu.memory_space<vmem>>, vector<128x128xf32>
    %cst_6 = arith.constant dense<0.000000e+00> : vector<8x128xf32>
    %19 = tpu.matmul %17, %18, %cst_6 {dimension_numbers = #tpu.dot_dimension_numbers<[1], [0], [0], [1], [0, 0, 1, 1], [], []>, precision = #tpu.contract_precision<fp32>} : vector<8x128xf32>, vector<128x128xf32>, vector<8x128xf32> -> vector<8x128xf32>
    %c0_7 = arith.constant 0 : index
    %c0_8 = arith.constant 0 : index
    %20 = vector.load %arg4[%c0_7, %c0_8] : memref<8x128xf32, #tpu.memory_space<vmem>>, vector<8x128xf32>
    tpu.vector_store %arg4[%c0_7, %c0_8], %19 {strides = array<i32>} : memref<8x128xf32, #tpu.memory_space<vmem>>, vector<8x128xf32>,
    return
  }
  func.func @transform_0(%arg0: i32) -> (i32, i32) {
    %c0_i32 = arith.constant 0 : i32
    %c0_i32_0 = arith.constant 0 : i32
    return %arg0, %c0_i32 : i32, i32
  }
  func.func @transform_1(%arg0: i32) -> (i32, i32) {
    %c0_i32 = arith.constant 0 : i32
    %c0_i32_0 = arith.constant 0 : i32
    %c0_i32_1 = arith.constant 0 : i32
    return %c0_i32, %c0_i32_0 : i32, i32
  }
  func.func @transform_2(%arg0: i32) -> (i32, i32) {
    %c0_i32 = arith.constant 0 : i32
    %c0_i32_0 = arith.constant 0 : i32
    %c0_i32_1 = arith.constant 0 : i32
    return %c0_i32, %c0_i32_0 : i32, i32
  }
  func.func @transform_3(%arg0: i32) -> (i32, i32) {
    %c0_i32 = arith.constant 0 : i32
    %c0_i32_0 = arith.constant 0 : i32
    return %arg0, %c0_i32 : i32, i32
  }
}

</mosaic_0001>

<llo_original>
// kernel: tpu_custom_call.1
$region0: #{tpu_custom_call.1}
  #allocation0 [shape = 'u32[]', space=smem, size = 0x4, offset = 0x4, fixed_abs, tag = 'smem constant byte address 0x4 - core index']
  #allocation1 [shape = 'u32[144,128]{1,0:T(1,128)}', space=vmem, size = 0x12000, scoped, tag = 'internal scratch']
  %s0 = inlined_call_operand.vmem [shape: s32[8,1], index: 0, kind: input, shape index: {}]
  %s1 = inlined_call_operand.vmem [shape: s32[1,128], index: 1, kind: input, shape index: {}]
  %s2 = inlined_call_operand.hbm [shape: f32[128,128], index: 2, kind: input, shape index: {}]
  %s3 = inlined_call_operand.hbm [shape: f32[8,128], index: 3, kind: output, shape index: {}]
  %s4 = sld [smem:[#allocation0]]
  $region26: #{tpu_custom_call.1} parent=0
    _
  %s6 = ssub.s32 1, %s4
  %s7 = scalar_select 0, %s6, %s4
  $region1: #{tpu_custom_call.1} parent=0
    #allocation2 [shape = 'u8[65536]{0}', space=vmem, size = 0x10000, scoped, tag = 'input window, operand 2, single buffered']
    #allocation3 [shape = 's32[1]{0}', space=sflag, size = 0x4, scoped, tag = 'scoped memory for tpu_custom_call.1']
    #allocation4 [shape = 's32[1]{0}', space=sflag, size = 0x4, scoped, tag = 'scoped memory for tpu_custom_call.1']
    #allocation5 [shape = 'u8[4096]{0}', space=vmem, size = 0x1000, scoped, tag = 'output window, operand 0, single buffered']
    %8 = vsyncpa [#allocation3], 0
    %9 = vsyncpa [#allocation4], 0
    // Predicated region
    $region2: #{tpu_custom_call.1} parent=1 // pred_check
      _
    $region3: #{tpu_custom_call.1} parent=1 // pred_check_branch
      %11 = sbr.rel (0) target = $region5
    $region4: #{tpu_custom_call.1} parent=1 // pred_region
      _
    $region5: #{tpu_custom_call.1} parent=1 // pred_fallthru
      _
    // Predicated region
    $region6: #{tpu_custom_call.1} parent=1 // pred_check
      _
    $region7: #{tpu_custom_call.1} parent=1 // pred_check_branch
      %13 = sbr.rel (0) target = $region9
    $region8: #{tpu_custom_call.1} parent=1 // pred_region
      _
    $region9: #{tpu_custom_call.1} parent=1 // pred_fallthru
      _
    // Predicated region
    $region10: #{tpu_custom_call.1} parent=1 // pred_check
      _
    $region11: #{tpu_custom_call.1} parent=1 // pred_check_branch
      %15 = sbr.rel (0) target = $region13
    $region12: #{tpu_custom_call.1} parent=1 // pred_region
      %s17 = ssub.s32 2048, 2048
      %18 = vsyncadd [#allocation3], %s17
      %s19 = sshll.u32 [#allocation2], 4
      %s20 = int_to_ptr.vmem [resolvable:$true] %s19
      %25 = dma.hbm_to_vmem [thread:$0]  %s2, 2048, %s20, [#allocation3], 128, 128, 8
    $region13: #{tpu_custom_call.1} parent=1 // pred_fallthru
      _
    // Predicated region
    $region14: #{tpu_custom_call.1} parent=1 // pred_check
      _
    $region15: #{tpu_custom_call.1} parent=1 // pred_check_branch
      %27 = sbr.rel (0) target = $region17
    $region16: #{tpu_custom_call.1} parent=1 // pred_region
      %28 = dma.done [#allocation3], 2048
    $region17: #{tpu_custom_call.1} parent=1 // pred_fallthru
      _
    %v29 = vld [vmem:[%s0] sm:$0xff]
    %v30 = vld [vmem:[%s1] sm:$0x1]
    %31 = vset.pattern.permute.xlu0 0
    %32 = vperm.xlu0 %31, %v29
    %v33 = vpop.permute.xlu0 %32
    %v34 = vlaneseq
    %v35 = vshrl.u32 %v34, 7
    %v36 = vsub.s32 0, %v35
    %v37 = vrot.slane %v30, %v36
    %vm38 = vcmp.eq.s32.totalorder %v33, %v37
    %v39 = vlaneseq
    %v40 = vand.u32 %v39, 127
    %v41 = vsel %vm38, %v40, 128
    %v42 = vand.u32 %v41, 65535
    %v43 = vshra.s32 %v41, 16
    %v44 = vcvt.s32.f32 %v42
    %v45 = vcvt.s32.f32 %v43
    %46 = vmin.xlane.f32.xlu0 %v45
    %v47 = vpop.xlane.xlu0 %46
    %vm48 = vcmp.eq.f32.partialorder %v45, %v47
    %v49 = vsel %vm48, %v44, inf
    %50 = vmin.xlane.f32.xlu0 %v49
    %v51 = vpop.xlane.xlu0 %50
    %v52 = vcvt.f32.s32 %v51
    %v53 = vcvt.f32.s32 %v47
    %v54 = vshll.u32 %v53, 16
    %v55 = vadd.s32 %v54, %v52
    %vm56 = vcmp.eq.s32.totalorder %v55, 128
    %v57 = vsel %vm56, 0, %v55
    %vm58 = vcmp.eq.s32.totalorder %v40, %v57
    %v59 = vsel %vm58, 1, 0
    %v60 = vcvt.s32.f32 %v59
    %v61 = vld [vmem:[#allocation2] sm:$0xff]
    %v62 = vld [vmem:[#allocation2 + $0x8] sm:$0xff]
    %v63 = vld [vmem:[#allocation2 + $0x10] sm:$0xff]
    %v64 = vld [vmem:[#allocation2 + $0x18] sm:$0xff]
    %v65 = vld [vmem:[#allocation2 + $0x20] sm:$0xff]
    %v66 = vld [vmem:[#allocation2 + $0x28] sm:$0xff]
    %v67 = vld [vmem:[#allocation2 + $0x30] sm:$0xff]
    %v68 = vld [vmem:[#allocation2 + $0x38] sm:$0xff]
    %v69 = vld [vmem:[#allocation2 + $0x40] sm:$0xff]
    %v70 = vld [vmem:[#allocation2 + $0x48] sm:$0xff]
    %v71 = vld [vmem:[#allocation2 + $0x50] sm:$0xff]
    %v72 = vld [vmem:[#allocation2 + $0x58] sm:$0xff]
    %v73 = vld [vmem:[#allocation2 + $0x60] sm:$0xff]
    %v74 = vld [vmem:[#allocation2 + $0x68] sm:$0xff]
    %v75 = vld [vmem:[#allocation2 + $0x70] sm:$0xff]
    %v76 = vld [vmem:[#allocation2 + $0x78] sm:$0xff]
    %77 = vmatprep.subr.mxu0 0.0
    %v78 = vand.u32 %v61, 4294901760
    %79 = vmatpush1.msra.mxu0 %v78
    %80 = vmatprep.subr.mxu0 0.0
    %v81 = vand.u32 %v62, 4294901760
    %82 = vmatpush1.msra.mxu0 %v81
    %83 = vmatprep.subr.mxu0 0.0
    %v84 = vand.u32 %v63, 4294901760
    %85 = vmatpush1.msra.mxu0 %v84
    %86 = vmatprep.subr.mxu0 0.0
    %v87 = vand.u32 %v64, 4294901760
    %88 = vmatpush1.msra.mxu0 %v87
    %89 = vmatprep.subr.mxu0 0.0
    %v90 = vand.u32 %v65, 4294901760
    %91 = vmatpush1.msra.mxu0 %v90
    %92 = vmatprep.subr.mxu0 0.0
    %v93 = vand.u32 %v66, 4294901760
    %94 = vmatpush1.msra.mxu0 %v93
    %95 = vmatprep.subr.mxu0 0.0
    %v96 = vand.u32 %v67, 4294901760
    %97 = vmatpush1.msra.mxu0 %v96
    %98 = vmatprep.subr.mxu0 0.0
    %v99 = vand.u32 %v68, 4294901760
    %100 = vmatpush1.msra.mxu0 %v99
    %101 = vmatprep.subr.mxu0 0.0
    %v102 = vand.u32 %v69, 4294901760
    %103 = vmatpush1.msra.mxu0 %v102
    %104 = vmatprep.subr.mxu0 0.0
    %v105 = vand.u32 %v70, 4294901760
    %106 = vmatpush1.msra.mxu0 %v105
    %107 = vmatprep.subr.mxu0 0.0
    %v108 = vand.u32 %v71, 4294901760
    %109 = vmatpush1.msra.mxu0 %v108
    %110 = vmatprep.subr.mxu0 0.0
    %v111 = vand.u32 %v72, 4294901760
    %112 = vmatpush1.msra.mxu0 %v111
    %113 = vmatprep.subr.mxu0 0.0
    %v114 = vand.u32 %v73, 4294901760
    %115 = vmatpush1.msra.mxu0 %v114
    %116 = vmatprep.subr.mxu0 0.0
    %v117 = vand.u32 %v74, 4294901760
    %118 = vmatpush1.msra.mxu0 %v117
    %119 = vmatprep.subr.mxu0 0.0
    %v120 = vand.u32 %v75, 4294901760
    %121 = vmatpush1.msra.mxu0 %v120
    %122 = vmatprep.subr.mxu0 0.0
    %v123 = vand.u32 %v76, 4294901760
    %124 = vmatpush1.msra.mxu0 %v123
    %125 = vmatprep.subr.mxu0 0.0
    %126 = vmatpush1.msra.mxu0 0.0
    %127 = vmatprep.subr.mxu0 0.0
    %128 = vmatpush1.msra.mxu0 0.0
    %129 = vmatprep.subr.mxu0 0.0
    %130 = vmatpush1.msra.mxu0 0.0
    %131 = vmatprep.subr.mxu0 0.0
    %132 = vmatpush1.msra.mxu0 0.0
    %133 = vmatprep.subr.mxu0 0.0
    %134 = vmatpush1.msra.mxu0 0.0
    %135 = vmatprep.subr.mxu0 0.0
    %136 = vmatpush1.msra.mxu0 0.0
    %137 = vmatprep.subr.mxu0 0.0
    %138 = vmatpush1.msra.mxu0 0.0
    %139 = vmatprep.subr.mxu0 0.0
    %140 = vmatpush1.msra.mxu0 0.0
    %141 = vmatprep.subr.mxu0 0.0
    %142 = vmatpush1.msra.mxu0 0.0
    %143 = vmatprep.subr.mxu0 0.0
    %144 = vmatpush1.msra.mxu0 0.0
    %145 = vmatprep.subr.mxu0 0.0
    %146 = vmatpush1.msra.mxu0 0.0
    %147 = vmatprep.subr.mxu0 0.0
    %148 = vmatpush1.msra.mxu0 0.0
    %149 = vmatprep.subr.mxu0 0.0
    %150 = vmatpush1.msra.mxu0 0.0
    %151 = vmatprep.subr.mxu0 0.0
    %152 = vmatpush1.msra.mxu0 0.0
    %153 = vmatprep.subr.mxu0 0.0
    %154 = vmatpush1.msra.mxu0 0.0
    %155 = vmatprep.subr.mxu0 0.0
    %156 = vmatpush1.msra.mxu0 0.0
    %157 = vmatprep.mubr.f32.mxu0 0.0
    %v158 = vand.u32 %v60, 4294901760
    %v159 = vsub.f32 %v60, %v158
    %v160 = vand.u32 %v159, 4294901760
    %v161 = vsub.f32 %v159, %v160
    %v162 = vand.u32 %v161, 4294901760
    %163 = vmatmul.mubr.f32.gmra.mrb[0].mxu0 %v162
    %v164 = vpop.f32.mrb[0].mxu0
    %v165 = vadd.f32 0.0, %v164
    %v166 = vpop.f32.mrb[0].mxu0
    %167 = vdwg.mxu0
    %168 = vmatprep.subr.mxu0 0.0
    %v169 = vand.u32 %v61, 4294901760
    %v170 = vsub.f32 %v61, %v169
    %v171 = vand.u32 %v170, 4294901760
    %v172 = vsub.f32 %v170, %v171
    %v173 = vand.u32 %v172, 4294901760
    %174 = vmatpush1.msra.mxu0 %v173
    %175 = vmatprep.subr.mxu0 0.0
    %v176 = vand.u32 %v62, 4294901760
    %v177 = vsub.f32 %v62, %v176
    %v178 = vand.u32 %v177, 4294901760
    %v179 = vsub.f32 %v177, %v178
    %v180 = vand.u32 %v179, 4294901760
    %181 = vmatpush1.msra.mxu0 %v180
    %182 = vmatprep.subr.mxu0 0.0
    %v183 = vand.u32 %v63, 4294901760
    %v184 = vsub.f32 %v63, %v183
    %v185 = vand.u32 %v184, 4294901760
    %v186 = vsub.f32 %v184, %v185
    %v187 = vand.u32 %v186, 4294901760
    %188 = vmatpush1.msra.mxu0 %v187
    %189 = vmatprep.subr.mxu0 0.0
    %v190 = vand.u32 %v64, 4294901760
    %v191 = vsub.f32 %v64, %v190
    %v192 = vand.u32 %v191, 4294901760
    %v193 = vsub.f32 %v191, %v192
    %v194 = vand.u32 %v193, 4294901760
    %195 = vmatpush1.msra.mxu0 %v194
    %196 = vmatprep.subr.mxu0 0.0
    %v197 = vand.u32 %v65, 4294901760
    %v198 = vsub.f32 %v65, %v197
    %v199 = vand.u32 %v198, 4294901760
    %v200 = vsub.f32 %v198, %v199
    %v201 = vand.u32 %v200, 4294901760
    %202 = vmatpush1.msra.mxu0 %v201
    %203 = vmatprep.subr.mxu0 0.0
    %v204 = vand.u32 %v66, 4294901760
    %v205 = vsub.f32 %v66, %v204
    %v206 = vand.u32 %v205, 4294901760
    %v207 = vsub.f32 %v205, %v206
    %v208 = vand.u32 %v207, 4294901760
    %209 = vmatpush1.msra.mxu0 %v208
    %210 = vmatprep.subr.mxu0 0.0
    %v211 = vand.u32 %v67, 4294901760
    %v212 = vsub.f32 %v67, %v211
    %v213 = vand.u32 %v212, 4294901760
    %v214 = vsub.f32 %v212, %v213
    %v215 = vand.u32 %v214, 4294901760
    %216 = vmatpush1.msra.mxu0 %v215
    %217 = vmatprep.subr.mxu0 0.0
    %v218 = vand.u32 %v68, 4294901760
    %v219 = vsub.f32 %v68, %v218
    %v220 = vand.u32 %v219, 4294901760
    %v221 = vsub.f32 %v219, %v220
    %v222 = vand.u32 %v221, 4294901760
    %223 = vmatpush1.msra.mxu0 %v222
    %224 = vmatprep.subr.mxu0 0.0
    %v225 = vand.u32 %v69, 4294901760
    %v226 = vsub.f32 %v69, %v225
    %v227 = vand.u32 %v226, 4294901760
    %v228 = vsub.f32 %v226, %v227
    %v229 = vand.u32 %v228, 4294901760
    %230 = vmatpush1.msra.mxu0 %v229
    %231 = vmatprep.subr.mxu0 0.0
    %v232 = vand.u32 %v70, 4294901760
    %v233 = vsub.f32 %v70, %v232
    %v234 = vand.u32 %v233, 4294901760
    %v235 = vsub.f32 %v233, %v234
    %v236 = vand.u32 %v235, 4294901760
    %237 = vmatpush1.msra.mxu0 %v236
    %238 = vmatprep.subr.mxu0 0.0
    %v239 = vand.u32 %v71, 4294901760
    %v240 = vsub.f32 %v71, %v239
    %v241 = vand.u32 %v240, 4294901760
    %v242 = vsub.f32 %v240, %v241
    %v243 = vand.u32 %v242, 4294901760
    %244 = vmatpush1.msra.mxu0 %v243
    %245 = vmatprep.subr.mxu0 0.0
    %v246 = vand.u32 %v72, 4294901760
    %v247 = vsub.f32 %v72, %v246
    %v248 = vand.u32 %v247, 4294901760
    %v249 = vsub.f32 %v247, %v248
    %v250 = vand.u32 %v249, 4294901760
    %251 = vmatpush1.msra.mxu0 %v250
    %252 = vmatprep.subr.mxu0 0.0
    %v253 = vand.u32 %v73, 4294901760
    %v254 = vsub.f32 %v73, %v253
    %v255 = vand.u32 %v254, 4294901760
    %v256 = vsub.f32 %v254, %v255
    %v257 = vand.u32 %v256, 4294901760
    %258 = vmatpush1.msra.mxu0 %v257
    %259 = vmatprep.subr.mxu0 0.0
    %v260 = vand.u32 %v74, 4294901760
    %v261 = vsub.f32 %v74, %v260
    %v262 = vand.u32 %v261, 4294901760
    %v263 = vsub.f32 %v261, %v262
    %v264 = vand.u32 %v263, 4294901760
    %265 = vmatpush1.msra.mxu0 %v264
    %266 = vmatprep.subr.mxu0 0.0
    %v267 = vand.u32 %v75, 4294901760
    %v268 = vsub.f32 %v75, %v267
    %v269 = vand.u32 %v268, 4294901760
    %v270 = vsub.f32 %v268, %v269
    %v271 = vand.u32 %v270, 4294901760
    %272 = vmatpush1.msra.mxu0 %v271
    %273 = vmatprep.subr.mxu0 0.0
    %v274 = vand.u32 %v76, 4294901760
    %v275 = vsub.f32 %v76, %v274
    %v276 = vand.u32 %v275, 4294901760
    %v277 = vsub.f32 %v275, %v276
    %v278 = vand.u32 %v277, 4294901760
    %279 = vmatpush1.msra.mxu0 %v278
    %280 = vmatprep.subr.mxu0 0.0
    %281 = vmatpush1.msra.mxu0 0.0
    %282 = vmatprep.subr.mxu0 0.0
    %283 = vmatpush1.msra.mxu0 0.0
    %284 = vmatprep.subr.mxu0 0.0
    %285 = vmatpush1.msra.mxu0 0.0
    %286 = vmatprep.subr.mxu0 0.0
    %287 = vmatpush1.msra.mxu0 0.0
    %288 = vmatprep.subr.mxu0 0.0
    %289 = vmatpush1.msra.mxu0 0.0
    %290 = vmatprep.subr.mxu0 0.0
    %291 = vmatpush1.msra.mxu0 0.0
    %292 = vmatprep.subr.mxu0 0.0
    %293 = vmatpush1.msra.mxu0 0.0
    %294 = vmatprep.subr.mxu0 0.0
    %295 = vmatpush1.msra.mxu0 0.0
    %296 = vmatprep.subr.mxu0 0.0
    %297 = vmatpush1.msra.mxu0 0.0
    %298 = vmatprep.subr.mxu0 0.0
    %299 = vmatpush1.msra.mxu0 0.0
    %300 = vmatprep.subr.mxu0 0.0
    %301 = vmatpush1.msra.mxu0 0.0
    %302 = vmatprep.subr.mxu0 0.0
    %303 = vmatpush1.msra.mxu0 0.0
    %304 = vmatprep.subr.mxu0 0.0
    %305 = vmatpush1.msra.mxu0 0.0
    %306 = vmatprep.subr.mxu0 0.0
    %307 = vmatpush1.msra.mxu0 0.0
    %308 = vmatprep.subr.mxu0 0.0
    %309 = vmatpush1.msra.mxu0 0.0
    %310 = vmatprep.subr.mxu0 0.0
    %311 = vmatpush1.msra.mxu0 0.0
    %312 = vmatprep.mubr.f32.mxu0 0.0
    %v313 = vand.u32 %v60, 4294901760
    %314 = vmatmul.mubr.f32.gmra.mrb[0].mxu0 %v313
    %v315 = vpop.f32.mrb[0].mxu0
    %v316 = vadd.f32 %v165, %v315
    %v317 = vpop.f32.mrb[0].mxu0
    %318 = vdwg.mxu0
    %319 = vmatprep.subr.mxu0 0.0
    %v320 = vand.u32 %v61, 4294901760
    %v321 = vsub.f32 %v61, %v320
    %322 = vmatpush1.msra.mxu0 %v321
    %323 = vmatprep.subr.mxu0 0.0
    %v324 = vand.u32 %v62, 4294901760
    %v325 = vsub.f32 %v62, %v324
    %326 = vmatpush1.msra.mxu0 %v325
    %327 = vmatprep.subr.mxu0 0.0
    %v328 = vand.u32 %v63, 4294901760
    %v329 = vsub.f32 %v63, %v328
    %330 = vmatpush1.msra.mxu0 %v329
    %331 = vmatprep.subr.mxu0 0.0
    %v332 = vand.u32 %v64, 4294901760
    %v333 = vsub.f32 %v64, %v332
    %334 = vmatpush1.msra.mxu0 %v333
    %335 = vmatprep.subr.mxu0 0.0
    %v336 = vand.u32 %v65, 4294901760
    %v337 = vsub.f32 %v65, %v336
    %338 = vmatpush1.msra.mxu0 %v337
    %339 = vmatprep.subr.mxu0 0.0
    %v340 = vand.u32 %v66, 4294901760
    %v341 = vsub.f32 %v66, %v340
    %342 = vmatpush1.msra.mxu0 %v341
    %343 = vmatprep.subr.mxu0 0.0
    %v344 = vand.u32 %v67, 4294901760
    %v345 = vsub.f32 %v67, %v344
    %346 = vmatpush1.msra.mxu0 %v345
    %347 = vmatprep.subr.mxu0 0.0
    %v348 = vand.u32 %v68, 4294901760
    %v349 = vsub.f32 %v68, %v348
    %350 = vmatpush1.msra.mxu0 %v349
    %351 = vmatprep.subr.mxu0 0.0
    %v352 = vand.u32 %v69, 4294901760
    %v353 = vsub.f32 %v69, %v352
    %354 = vmatpush1.msra.mxu0 %v353
    %355 = vmatprep.subr.mxu0 0.0
    %v356 = vand.u32 %v70, 4294901760
    %v357 = vsub.f32 %v70, %v356
    %358 = vmatpush1.msra.mxu0 %v357
    %359 = vmatprep.subr.mxu0 0.0
    %v360 = vand.u32 %v71, 4294901760
    %v361 = vsub.f32 %v71, %v360
    %362 = vmatpush1.msra.mxu0 %v361
    %363 = vmatprep.subr.mxu0 0.0
    %v364 = vand.u32 %v72, 4294901760
    %v365 = vsub.f32 %v72, %v364
    %366 = vmatpush1.msra.mxu0 %v365
    %367 = vmatprep.subr.mxu0 0.0
    %v368 = vand.u32 %v73, 4294901760
    %v369 = vsub.f32 %v73, %v368
    %370 = vmatpush1.msra.mxu0 %v369
    %371 = vmatprep.subr.mxu0 0.0
    %v372 = vand.u32 %v74, 4294901760
    %v373 = vsub.f32 %v74, %v372
    %374 = vmatpush1.msra.mxu0 %v373
    %375 = vmatprep.subr.mxu0 0.0
    %v376 = vand.u32 %v75, 4294901760
    %v377 = vsub.f32 %v75, %v376
    %378 = vmatpush1.msra.mxu0 %v377
    %379 = vmatprep.subr.mxu0 0.0
    %v380 = vand.u32 %v76, 4294901760
    %v381 = vsub.f32 %v76, %v380
    %382 = vmatpush1.msra.mxu0 %v381
    %383 = vmatprep.subr.mxu0 0.0
    %384 = vmatpush1.msra.mxu0 0.0
    %385 = vmatprep.subr.mxu0 0.0
    %386 = vmatpush1.msra.mxu0 0.0
    %387 = vmatprep.subr.mxu0 0.0
    %388 = vmatpush1.msra.mxu0 0.0
    %389 = vmatprep.subr.mxu0 0.0
    %390 = vmatpush1.msra.mxu0 0.0
    %391 = vmatprep.subr.mxu0 0.0
    %392 = vmatpush1.msra.mxu0 0.0
    %393 = vmatprep.subr.mxu0 0.0
    %394 = vmatpush1.msra.mxu0 0.0
    %395 = vmatprep.subr.mxu0 0.0
    %396 = vmatpush1.msra.mxu0 0.0
    %397 = vmatprep.subr.mxu0 0.0
    %398 = vmatpush1.msra.mxu0 0.0
    %399 = vmatprep.subr.mxu0 0.0
    %400 = vmatpush1.msra.mxu0 0.0
    %401 = vmatprep.subr.mxu0 0.0
    %402 = vmatpush1.msra.mxu0 0.0
    %403 = vmatprep.subr.mxu0 0.0
    %404 = vmatpush1.msra.mxu0 0.0
    %405 = vmatprep.subr.mxu0 0.0
    %406 = vmatpush1.msra.mxu0 0.0
    %407 = vmatprep.subr.mxu0 0.0
    %408 = vmatpush1.msra.mxu0 0.0
    %409 = vmatprep.subr.mxu0 0.0
    %410 = vmatpush1.msra.mxu0 0.0
    %411 = vmatprep.subr.mxu0 0.0
    %412 = vmatpush1.msra.mxu0 0.0
    %413 = vmatprep.subr.mxu0 0.0
    %414 = vmatpush1.msra.mxu0 0.0
    %415 = vmatprep.mubr.f32.mxu0 0.0
    %v416 = vand.u32 %v60, 4294901760
    %v417 = vsub.f32 %v60, %v416
    %418 = vmatmul.mubr.f32.gmra.mrb[0].mxu0 %v417
    %v419 = vpop.f32.mrb[0].mxu0
    %v420 = vadd.f32 %v316, %v419
    %v421 = vpop.f32.mrb[0].mxu0
    %422 = vdwg.mxu0
    %423 = vmatprep.subr.mxu0 0.0
    %v424 = vand.u32 %v61, 4294901760
    %425 = vmatpush1.msra.mxu0 %v424
    %426 = vmatprep.subr.mxu0 0.0
    %v427 = vand.u32 %v62, 4294901760
    %428 = vmatpush1.msra.mxu0 %v427
    %429 = vmatprep.subr.mxu0 0.0
    %v430 = vand.u32 %v63, 4294901760
    %431 = vmatpush1.msra.mxu0 %v430
    %432 = vmatprep.subr.mxu0 0.0
    %v433 = vand.u32 %v64, 4294901760
    %434 = vmatpush1.msra.mxu0 %v433
    %435 = vmatprep.subr.mxu0 0.0
    %v436 = vand.u32 %v65, 4294901760
    %437 = vmatpush1.msra.mxu0 %v436
    %438 = vmatprep.subr.mxu0 0.0
    %v439 = vand.u32 %v66, 4294901760
    %440 = vmatpush1.msra.mxu0 %v439
    %441 = vmatprep.subr.mxu0 0.0
    %v442 = vand.u32 %v67, 4294901760
    %443 = vmatpush1.msra.mxu0 %v442
    %444 = vmatprep.subr.mxu0 0.0
    %v445 = vand.u32 %v68, 4294901760
    %446 = vmatpush1.msra.mxu0 %v445
    %447 = vmatprep.subr.mxu0 0.0
    %v448 = vand.u32 %v69, 4294901760
    %449 = vmatpush1.msra.mxu0 %v448
    %450 = vmatprep.subr.mxu0 0.0
    %v451 = vand.u32 %v70, 4294901760
    %452 = vmatpush1.msra.mxu0 %v451
    %453 = vmatprep.subr.mxu0 0.0
    %v454 = vand.u32 %v71, 4294901760
    %455 = vmatpush1.msra.mxu0 %v454
    %456 = vmatprep.subr.mxu0 0.0
    %v457 = vand.u32 %v72, 4294901760
    %458 = vmatpush1.msra.mxu0 %v457
    %459 = vmatprep.subr.mxu0 0.0
    %v460 = vand.u32 %v73, 4294901760
    %461 = vmatpush1.msra.mxu0 %v460
    %462 = vmatprep.subr.mxu0 0.0
    %v463 = vand.u32 %v74, 4294901760
    %464 = vmatpush1.msra.mxu0 %v463
    %465 = vmatprep.subr.mxu0 0.0
    %v466 = vand.u32 %v75, 4294901760
    %467 = vmatpush1.msra.mxu0 %v466
    %468 = vmatprep.subr.mxu0 0.0
    %v469 = vand.u32 %v76, 4294901760
    %470 = vmatpush1.msra.mxu0 %v469
    %471 = vmatprep.subr.mxu0 0.0
    %472 = vmatpush1.msra.mxu0 0.0
    %473 = vmatprep.subr.mxu0 0.0
    %474 = vmatpush1.msra.mxu0 0.0
    %475 = vmatprep.subr.mxu0 0.0
    %476 = vmatpush1.msra.mxu0 0.0
    %477 = vmatprep.subr.mxu0 0.0
    %478 = vmatpush1.msra.mxu0 0.0
    %479 = vmatprep.subr.mxu0 0.0
    %480 = vmatpush1.msra.mxu0 0.0
    %481 = vmatprep.subr.mxu0 0.0
    %482 = vmatpush1.msra.mxu0 0.0
    %483 = vmatprep.subr.mxu0 0.0
    %484 = vmatpush1.msra.mxu0 0.0
    %485 = vmatprep.subr.mxu0 0.0
    %486 = vmatpush1.msra.mxu0 0.0
    %487 = vmatprep.subr.mxu0 0.0
    %488 = vmatpush1.msra.mxu0 0.0
    %489 = vmatprep.subr.mxu0 0.0
    %490 = vmatpush1.msra.mxu0 0.0
    %491 = vmatprep.subr.mxu0 0.0
    %492 = vmatpush1.msra.mxu0 0.0
    %493 = vmatprep.subr.mxu0 0.0
    %494 = vmatpush1.msra.mxu0 0.0
    %495 = vmatprep.subr.mxu0 0.0
    %496 = vmatpush1.msra.mxu0 0.0
    %497 = vmatprep.subr.mxu0 0.0
    %498 = vmatpush1.msra.mxu0 0.0
    %499 = vmatprep.subr.mxu0 0.0
    %500 = vmatpush1.msra.mxu0 0.0
    %501 = vmatprep.subr.mxu0 0.0
    %502 = vmatpush1.msra.mxu0 0.0
    %503 = vmatprep.mubr.f32.mxu0 0.0
    %v504 = vand.u32 %v60, 4294901760
    %v505 = vsub.f32 %v60, %v504
    %v506 = vand.u32 %v505, 4294901760
    %507 = vmatmul.mubr.f32.gmra.mrb[0].mxu0 %v506
    %v508 = vpop.f32.mrb[0].mxu0
    %v509 = vadd.f32 %v420, %v508
    %v510 = vpop.f32.mrb[0].mxu0
    %511 = vdwg.mxu0
    %512 = vmatprep.subr.mxu0 0.0
    %v513 = vand.u32 %v61, 4294901760
    %v514 = vsub.f32 %v61, %v513
    %v515 = vand.u32 %v514, 4294901760
    %516 = vmatpush1.msra.mxu0 %v515
    %517 = vmatprep.subr.mxu0 0.0
    %v518 = vand.u32 %v62, 4294901760
    %v519 = vsub.f32 %v62, %v518
    %v520 = vand.u32 %v519, 4294901760
    %521 = vmatpush1.msra.mxu0 %v520
    %522 = vmatprep.subr.mxu0 0.0
    %v523 = vand.u32 %v63, 4294901760
    %v524 = vsub.f32 %v63, %v523
    %v525 = vand.u32 %v524, 4294901760
    %526 = vmatpush1.msra.mxu0 %v525
    %527 = vmatprep.subr.mxu0 0.0
    %v528 = vand.u32 %v64, 4294901760
    %v529 = vsub.f32 %v64, %v528
    %v530 = vand.u32 %v529, 4294901760
    %531 = vmatpush1.msra.mxu0 %v530
    %532 = vmatprep.subr.mxu0 0.0
    %v533 = vand.u32 %v65, 4294901760
    %v534 = vsub.f32 %v65, %v533
    %v535 = vand.u32 %v534, 4294901760
    %536 = vmatpush1.msra.mxu0 %v535
    %537 = vmatprep.subr.mxu0 0.0
    %v538 = vand.u32 %v66, 4294901760
    %v539 = vsub.f32 %v66, %v538
    %v540 = vand.u32 %v539, 4294901760
    %541 = vmatpush1.msra.mxu0 %v540
    %542 = vmatprep.subr.mxu0 0.0
    %v543 = vand.u32 %v67, 4294901760
    %v544 = vsub.f32 %v67, %v543
    %v545 = vand.u32 %v544, 4294901760
    %546 = vmatpush1.msra.mxu0 %v545
    %547 = vmatprep.subr.mxu0 0.0
    %v548 = vand.u32 %v68, 4294901760
    %v549 = vsub.f32 %v68, %v548
    %v550 = vand.u32 %v549, 4294901760
    %551 = vmatpush1.msra.mxu0 %v550
    %552 = vmatprep.subr.mxu0 0.0
    %v553 = vand.u32 %v69, 4294901760
    %v554 = vsub.f32 %v69, %v553
    %v555 = vand.u32 %v554, 4294901760
    %556 = vmatpush1.msra.mxu0 %v555
    %557 = vmatprep.subr.mxu0 0.0
    %v558 = vand.u32 %v70, 4294901760
    %v559 = vsub.f32 %v70, %v558
    %v560 = vand.u32 %v559, 4294901760
    %561 = vmatpush1.msra.mxu0 %v560
    %562 = vmatprep.subr.mxu0 0.0
    %v563 = vand.u32 %v71, 4294901760
    %v564 = vsub.f32 %v71, %v563
    %v565 = vand.u32 %v564, 4294901760
    %566 = vmatpush1.msra.mxu0 %v565
    %567 = vmatprep.subr.mxu0 0.0
    %v568 = vand.u32 %v72, 4294901760
    %v569 = vsub.f32 %v72, %v568
    %v570 = vand.u32 %v569, 4294901760
    %571 = vmatpush1.msra.mxu0 %v570
    %572 = vmatprep.subr.mxu0 0.0
    %v573 = vand.u32 %v73, 4294901760
    %v574 = vsub.f32 %v73, %v573
    %v575 = vand.u32 %v574, 4294901760
    %576 = vmatpush1.msra.mxu0 %v575
    %577 = vmatprep.subr.mxu0 0.0
    %v578 = vand.u32 %v74, 4294901760
    %v579 = vsub.f32 %v74, %v578
    %v580 = vand.u32 %v579, 4294901760
    %581 = vmatpush1.msra.mxu0 %v580
    %582 = vmatprep.subr.mxu0 0.0
    %v583 = vand.u32 %v75, 4294901760
    %v584 = vsub.f32 %v75, %v583
    %v585 = vand.u32 %v584, 4294901760
    %586 = vmatpush1.msra.mxu0 %v585
    %587 = vmatprep.subr.mxu0 0.0
    %v588 = vand.u32 %v76, 4294901760
    %v589 = vsub.f32 %v76, %v588
    %v590 = vand.u32 %v589, 4294901760
    %591 = vmatpush1.msra.mxu0 %v590
    %592 = vmatprep.subr.mxu0 0.0
    %593 = vmatpush1.msra.mxu0 0.0
    %594 = vmatprep.subr.mxu0 0.0
    %595 = vmatpush1.msra.mxu0 0.0
    %596 = vmatprep.subr.mxu0 0.0
    %597 = vmatpush1.msra.mxu0 0.0
    %598 = vmatprep.subr.mxu0 0.0
    %599 = vmatpush1.msra.mxu0 0.0
    %600 = vmatprep.subr.mxu0 0.0
    %601 = vmatpush1.msra.mxu0 0.0
    %602 = vmatprep.subr.mxu0 0.0
    %603 = vmatpush1.msra.mxu0 0.0
    %604 = vmatprep.subr.mxu0 0.0
    %605 = vmatpush1.msra.mxu0 0.0
    %606 = vmatprep.subr.mxu0 0.0
    %607 = vmatpush1.msra.mxu0 0.0
    %608 = vmatprep.subr.mxu0 0.0
    %609 = vmatpush1.msra.mxu0 0.0
    %610 = vmatprep.subr.mxu0 0.0
    %611 = vmatpush1.msra.mxu0 0.0
    %612 = vmatprep.subr.mxu0 0.0
    %613 = vmatpush1.msra.mxu0 0.0
    %614 = vmatprep.subr.mxu0 0.0
    %615 = vmatpush1.msra.mxu0 0.0
    %616 = vmatprep.subr.mxu0 0.0
    %617 = vmatpush1.msra.mxu0 0.0
    %618 = vmatprep.subr.mxu0 0.0
    %619 = vmatpush1.msra.mxu0 0.0
    %620 = vmatprep.subr.mxu0 0.0
    %621 = vmatpush1.msra.mxu0 0.0
    %622 = vmatprep.subr.mxu0 0.0
    %623 = vmatpush1.msra.mxu0 0.0
    %624 = vmatprep.mubr.f32.mxu0 0.0
    %v625 = vand.u32 %v60, 4294901760
    %626 = vmatmul.mubr.f32.gmra.mrb[0].mxu0 %v625
    %v627 = vpop.f32.mrb[0].mxu0
    %v628 = vadd.f32 %v509, %v627
    %v629 = vpop.f32.mrb[0].mxu0
    %630 = vdwg.mxu0
    %631 = vmatprep.subr.mxu0 0.0
    %v632 = vand.u32 %v61, 4294901760
    %633 = vmatpush1.msra.mxu0 %v632
    %634 = vmatprep.subr.mxu0 0.0
    %v635 = vand.u32 %v62, 4294901760
    %636 = vmatpush1.msra.mxu0 %v635
    %637 = vmatprep.subr.mxu0 0.0
    %v638 = vand.u32 %v63, 4294901760
    %639 = vmatpush1.msra.mxu0 %v638
    %640 = vmatprep.subr.mxu0 0.0
    %v641 = vand.u32 %v64, 4294901760
    %642 = vmatpush1.msra.mxu0 %v641
    %643 = vmatprep.subr.mxu0 0.0
    %v644 = vand.u32 %v65, 4294901760
    %645 = vmatpush1.msra.mxu0 %v644
    %646 = vmatprep.subr.mxu0 0.0
    %v647 = vand.u32 %v66, 4294901760
    %648 = vmatpush1.msra.mxu0 %v647
    %649 = vmatprep.subr.mxu0 0.0
    %v650 = vand.u32 %v67, 4294901760
    %651 = vmatpush1.msra.mxu0 %v650
    %652 = vmatprep.subr.mxu0 0.0
    %v653 = vand.u32 %v68, 4294901760
    %654 = vmatpush1.msra.mxu0 %v653
    %655 = vmatprep.subr.mxu0 0.0
    %v656 = vand.u32 %v69, 4294901760
    %657 = vmatpush1.msra.mxu0 %v656
    %658 = vmatprep.subr.mxu0 0.0
    %v659 = vand.u32 %v70, 4294901760
    %660 = vmatpush1.msra.mxu0 %v659
    %661 = vmatprep.subr.mxu0 0.0
    %v662 = vand.u32 %v71, 4294901760
    %663 = vmatpush1.msra.mxu0 %v662
    %664 = vmatprep.subr.mxu0 0.0
    %v665 = vand.u32 %v72, 4294901760
    %666 = vmatpush1.msra.mxu0 %v665
    %667 = vmatprep.subr.mxu0 0.0
    %v668 = vand.u32 %v73, 4294901760
    %669 = vmatpush1.msra.mxu0 %v668
    %670 = vmatprep.subr.mxu0 0.0
    %v671 = vand.u32 %v74, 4294901760
    %672 = vmatpush1.msra.mxu0 %v671
    %673 = vmatprep.subr.mxu0 0.0
    %v674 = vand.u32 %v75, 4294901760
    %675 = vmatpush1.msra.mxu0 %v674
    %676 = vmatprep.subr.mxu0 0.0
    %v677 = vand.u32 %v76, 4294901760
    %678 = vmatpush1.msra.mxu0 %v677
    %679 = vmatprep.subr.mxu0 0.0
    %680 = vmatpush1.msra.mxu0 0.0
    %681 = vmatprep.subr.mxu0 0.0
    %682 = vmatpush1.msra.mxu0 0.0
    %683 = vmatprep.subr.mxu0 0.0
    %684 = vmatpush1.msra.mxu0 0.0
    %685 = vmatprep.subr.mxu0 0.0
    %686 = vmatpush1.msra.mxu0 0.0
    %687 = vmatprep.subr.mxu0 0.0
    %688 = vmatpush1.msra.mxu0 0.0
    %689 = vmatprep.subr.mxu0 0.0
    %690 = vmatpush1.msra.mxu0 0.0
    %691 = vmatprep.subr.mxu0 0.0
    %692 = vmatpush1.msra.mxu0 0.0
    %693 = vmatprep.subr.mxu0 0.0
    %694 = vmatpush1.msra.mxu0 0.0
    %695 = vmatprep.subr.mxu0 0.0
    %696 = vmatpush1.msra.mxu0 0.0
    %697 = vmatprep.subr.mxu0 0.0
    %698 = vmatpush1.msra.mxu0 0.0
    %699 = vmatprep.subr.mxu0 0.0
    %700 = vmatpush1.msra.mxu0 0.0
    %701 = vmatprep.subr.mxu0 0.0
    %702 = vmatpush1.msra.mxu0 0.0
    %703 = vmatprep.subr.mxu0 0.0
    %704 = vmatpush1.msra.mxu0 0.0
    %705 = vmatprep.subr.mxu0 0.0
    %706 = vmatpush1.msra.mxu0 0.0
    %707 = vmatprep.subr.mxu0 0.0
    %708 = vmatpush1.msra.mxu0 0.0
    %709 = vmatprep.subr.mxu0 0.0
    %710 = vmatpush1.msra.mxu0 0.0
    %711 = vmatprep.mubr.f32.mxu0 0.0
    %v712 = vand.u32 %v60, 4294901760
    %713 = vmatmul.mubr.f32.gmra.mrb[0].mxu0 %v712
    %v714 = vpop.f32.mrb[0].mxu0
    %v715 = vadd.f32 %v628, %v714
    %v716 = vpop.f32.mrb[0].mxu0
    %717 = vdwg.mxu0
    %718 = vst [vmem:[#allocation5] sm:$0xff] %v715
    // Predicated region
    $region18: #{tpu_custom_call.1} parent=1 // pred_check
      _
    $region19: #{tpu_custom_call.1} parent=1 // pred_check_branch
      %720 = sbr.rel (0) target = $region21
    $region20: #{tpu_custom_call.1} parent=1 // pred_region
      %s722 = ssub.s32 128, 128
      %723 = vsyncadd [#allocation4], %s722
      %s725 = sshll.u32 [#allocation5], 4
      %s726 = int_to_ptr.vmem [resolvable:$true] %s725
      %728 = dma.vmem_to_hbm [thread:$0]  %s726, 128, %s3, [#allocation4]
    $region21: #{tpu_custom_call.1} parent=1 // pred_fallthru
      _
    // Predicated region
    $region22: #{tpu_custom_call.1} parent=1 // pred_check
      _
    $region23: #{tpu_custom_call.1} parent=1 // pred_check_branch
      %730 = sbr.rel (0) target = $region25
    $region24: #{tpu_custom_call.1} parent=1 // pred_region
      %731 = dma.done [#allocation4], 128
    $region25: #{tpu_custom_call.1} parent=1 // pred_fallthru
      _
    %732 = vsyncpa [#allocation3], 1
    %733 = vsyncpa [#allocation4], 1

</llo_original>
